<compile_context>
chip_gen: v7x
topology: tpu7x:2x2x1
jax: 0.10.0
libtpu: 0.0.40
codegen_flags: <defaults>
</compile_context>

<pallas_src>
import functools
import math

import jax
import jax.numpy as jnp
from jax.experimental import pallas as pl
from jax.experimental.pallas import tpu as pltpu

LN_EPS = 1e-5                      # nn.LayerNorm default
_INV_SQRT2 = 0.7071067811865476
_MiB = 1024 * 1024
_MIN_GRID_STEPS = 4                # >= 2x v7x TensorCores, keeps pipelining alive


def _round_up(x, m):
    return ((x + m - 1) // m) * m


def _chip_defaults():
    """Generation-aware (row-tile cap, vmem_limit_bytes)."""
    try:
        vmem = int(pltpu.get_tpu_info().vmem_capacity_bytes)
    except Exception:
        vmem = 64 * _MiB           # conservative fallback (v7x-sized VMEM)
    if vmem <= 64 * _MiB:          # v7x: 64 MiB per TensorCore
        return 128, 40 * _MiB
    return 512, 96 * _MiB          # v5e / v6e: 128 MiB physical VMEM


_DEFAULT_TM, _VMEM_LIMIT_BYTES = _chip_defaults()


def _const_spec(shape):
    """Grid-invariant operand: constant index map + single pipeline buffer."""
    idx = lambda i: (0, 0)
    try:
        return pl.BlockSpec(shape, idx, pipeline_mode=pl.Buffered(1))
    except TypeError:              # older BlockSpec without pipeline_mode kwarg
        return pl.BlockSpec(shape, idx)


def _layernorm(t, gamma, beta):
    # E[x] and E[x^2] are independent cross-lane reductions (overlap on the
    # XLU) instead of the serialized reduce -> sub -> square -> reduce chain.
    mu = jnp.mean(t, axis=-1, keepdims=True)
    ms = jnp.mean(t * t, axis=-1, keepdims=True)
    var = jnp.maximum(ms - mu * mu, 0.0)
    return (t - mu) * jax.lax.rsqrt(var + LN_EPS) * gamma + beta


def _gelu(t, approx):
    if approx:
        # tanh form -> EUP slot (otherwise idle); slight numerics difference.
        c = math.sqrt(2.0 / math.pi)
        return 0.5 * t * (1.0 + jnp.tanh(c * (t + 0.044715 * t * t * t)))
    # exact erf formulation == PyTorch nn.GELU() default
    return 0.5 * t * (1.0 + jax.lax.erf(t * _INV_SQRT2))


def _gating_unit_kernel(
    x_ref,      # (tm, dim)         input row tile
    w12_ref,    # (dim, 2*hidden)   fused proj_1 | proj_2 weights (compute dtype)
    b1_ref,     # (1, hidden)       proj_1 bias (f32)
    b2_ref,     # (1, hidden)       proj_2 bias (f32)
    w3_ref,     # (hidden, dim)     proj_3 weights (compute dtype)
    b3_ref,     # (1, dim)          proj_3 bias (f32)
    lng_ref,    # (1, hidden)       shared LayerNorm gamma (f32)
    lnb_ref,    # (1, hidden)       shared LayerNorm beta  (f32)
    o_ref,      # (tm, dim)         output row tile
    uv_ref,     # (tm, 2*hidden)    f32 VMEM scratch for the fused matmul
    *,
    hidden,
    compute_dtype,
    approx_gelu,
):
    x = x_ref[...].astype(compute_dtype)

    # One MXU matmul for both branches (shared LHS), f32 accumulation, written
    # straight into persistent VMEM scratch so u / v are static lane-aligned
    # views of it rather than extra full-size f32 temporaries.
    uv_ref[...] = jnp.dot(x, w12_ref[...], preferred_element_type=jnp.float32)

    gamma = lng_ref[...]
    beta = lnb_ref[...]
    # Biases are added after the split (lane-aligned: hidden % 128 == 0).
    u = _layernorm(_gelu(uv_ref[:, :hidden] + b1_ref[...], approx_gelu), gamma, beta)
    v = _layernorm(uv_ref[:, hidden:] + b2_ref[...], gamma, beta)

    gate = (u * v).astype(compute_dtype)
    out = jnp.dot(gate, w3_ref[...], preferred_element_type=jnp.float32)
    o_ref[...] = (out + b3_ref[...]).astype(o_ref.dtype)


@functools.partial(
    jax.jit, static_argnames=("tm", "compute_dtype", "approx_gelu", "out_dtype"))
def activator_gating_unit(x, params, *, tm=None, compute_dtype=jnp.bfloat16,
                          approx_gelu=False, out_dtype=None):
    """x: (..., dim) -> (..., dim). Matches ActivatorGatingUnit.forward."""
    orig_shape = x.shape
    dim = orig_shape[-1]
    hidden = params["w1"].shape[1]
    if dim % 128 != 0 or hidden % 128 != 0:
        # Lane-aligned u|v split and lane-dense output stores require this.
        raise ValueError(
            f"dim ({dim}) and hidden_dim ({hidden}) must be multiples of 128")

    x2d = x.reshape(-1, dim)
    n = x2d.shape[0]
    out_dtype = x.dtype if out_dtype is None else out_dtype

    # Fuse proj_1 / proj_2 (identical LHS) into one weight matrix; matmul
    # operands in the compute dtype, biases / LN params stay f32.
    w12 = jnp.concatenate([params["w1"], params["w2"]], axis=1).astype(compute_dtype)
    b1 = params["b1"].astype(jnp.float32)
    b2 = params["b2"].astype(jnp.float32)
    w3 = params["w3"].astype(compute_dtype)
    b3 = params["b3"].astype(jnp.float32)
    ln_g = params["ln_g"].astype(jnp.float32)
    ln_b = params["ln_b"].astype(jnp.float32)

    # Row tiling: chip-default cap, clamped for tiny inputs, shrunk so the
    # grid has >= _MIN_GRID_STEPS steps (megacore sharding + DMA overlap),
    # then rows padded to a tile multiple.
    row_align = 16 if x2d.dtype == jnp.bfloat16 else 8
    tm_cap = _DEFAULT_TM if tm is None else tm
    tm_eff = _round_up(max(row_align, min(tm_cap, _round_up(n, row_align))), row_align)
    while pl.cdiv(n, tm_eff) < _MIN_GRID_STEPS and tm_eff > row_align:
        tm_eff = _round_up(tm_eff // 2, row_align)
    n_pad = _round_up(n, tm_eff)
    if n_pad != n:
        x2d = jnp.pad(x2d, ((0, n_pad - n), (0, 0)))

    kernel = functools.partial(
        _gating_unit_kernel, hidden=hidden,
        compute_dtype=compute_dtype, approx_gelu=approx_gelu)

    out = pl.pallas_call(
        kernel,
        out_shape=jax.ShapeDtypeStruct((n_pad, dim), out_dtype),
        grid_spec=pltpu.PrefetchScalarGridSpec(
            num_scalar_prefetch=0,
            grid=(n_pad // tm_eff,),
            in_specs=[
                pl.BlockSpec((tm_eff, dim), lambda i: (i, 0)),
                _const_spec((dim, 2 * hidden)),
                _const_spec((1, hidden)),
                _const_spec((1, hidden)),
                _const_spec((hidden, dim)),
                _const_spec((1, dim)),
                _const_spec((1, hidden)),
                _const_spec((1, hidden)),
            ],
            out_specs=pl.BlockSpec((tm_eff, dim), lambda i: (i, 0)),
            scratch_shapes=[pltpu.VMEM((tm_eff, 2 * hidden), jnp.float32)],
        ),
        compiler_params=pltpu.CompilerParams(
            dimension_semantics=("parallel",),
            vmem_limit_bytes=_VMEM_LIMIT_BYTES,
        ),
    )(x2d, w12, b1, b2, w3, b3, ln_g, ln_b)

    if n_pad != n:
        out = out[:n]
    return out.reshape(orig_shape)


def init_params(key, dim, hidden):
    ks = jax.random.split(key, 6)
    bd = 1.0 / math.sqrt(dim)
    bh = 1.0 / math.sqrt(hidden)
    return dict(
        w1=jax.random.uniform(ks[0], (dim, hidden), jnp.float32, -bd, bd),
        b1=jax.random.uniform(ks[1], (1, hidden), jnp.float32, -bd, bd),
        w2=jax.random.uniform(ks[2], (dim, hidden), jnp.float32, -bd, bd),
        b2=jax.random.uniform(ks[3], (1, hidden), jnp.float32, -bd, bd),
        w3=jax.random.uniform(ks[4], (hidden, dim), jnp.float32, -bh, bh),
        b3=jax.random.uniform(ks[5], (1, dim), jnp.float32, -bh, bh),
        ln_g=jnp.ones((1, hidden), jnp.float32),
        ln_b=jnp.zeros((1, hidden), jnp.float32),
    )


def activator_gating_reference(x, params):
    """Pure-JAX f32 reference mirroring the PyTorch module exactly."""
    xf = x.astype(jnp.float32)
    u = _gelu(xf @ params["w1"] + params["b1"], approx=False)
    u = _layernorm(u, params["ln_g"], params["ln_b"])
    v = _layernorm(xf @ params["w2"] + params["b2"], params["ln_g"], params["ln_b"])
    return (u * v) @ params["w3"] + params["b3"]


if __name__ == "__main__":
    batch, seq = 2, 64
    dim, hidden = 128, 256   # lane-dense: multiples of 128

    key = jax.random.PRNGKey(0)
    kx, kp = jax.random.split(key)
    x = jax.random.normal(kx, (batch, seq, dim), jnp.float32)
    params = init_params(kp, dim, hidden)

    ref = activator_gating_reference(x, params)

    # f32 compute path: tight correctness check against the f32 reference.
    out_f32 = jax.block_until_ready(
        activator_gating_unit(x, params, compute_dtype=jnp.float32))
    assert out_f32.shape == x.shape
    assert jnp.allclose(out_f32, ref, atol=2e-3, rtol=2e-3), "f32 kernel mismatch"

    # bf16 MXU fast path (default): relative-L2 check vs the f32 reference.
    out_bf16 = jax.block_until_ready(activator_gating_unit(x, params))
    assert out_bf16.shape == x.shape
    rel_l2 = float(jnp.linalg.norm(out_bf16 - ref) / jnp.linalg.norm(ref))
    assert rel_l2 < 5e-2, f"bf16 kernel rel-L2 error too large: {rel_l2}"

    # bf16-output + approx (tanh) GELU fast path: looser tolerance.
    out_lo = jax.block_until_ready(
        activator_gating_unit(x, params, approx_gelu=True, out_dtype=jnp.bfloat16))
    assert out_lo.shape == x.shape and out_lo.dtype == jnp.bfloat16
    rel_l2_lo = float(jnp.linalg.norm(out_lo.astype(jnp.float32) - ref)
                      / jnp.linalg.norm(ref))
    assert rel_l2_lo < 1e-1, f"bf16-out/approx-gelu rel-L2 too large: {rel_l2_lo}"

    print("KERNEL_OK")
</pallas_src>

<mosaic_0001>
module attributes {stable_mosaic.version = 11 : i64} {
  func.func @_gating_unit_kernel(%arg0: i32, %arg1: memref<32x128xf32, #tpu.memory_space<vmem>>, %arg2: memref<128x512xf32, #tpu.memory_space<vmem>>, %arg3: memref<1x256xf32, #tpu.memory_space<vmem>>, %arg4: memref<1x256xf32, #tpu.memory_space<vmem>>, %arg5: memref<256x128xf32, #tpu.memory_space<vmem>>, %arg6: memref<1x128xf32, #tpu.memory_space<vmem>>, %arg7: memref<1x256xf32, #tpu.memory_space<vmem>>, %arg8: memref<1x256xf32, #tpu.memory_space<vmem>>, %arg9: memref<32x128xf32, #tpu.memory_space<vmem>>, %arg10: memref<32x512xf32, #tpu.memory_space<vmem>>) attributes {dimension_semantics = [#tpu.dimension_semantics<parallel>], iteration_bounds = array<i64: 4>, scalar_prefetch = 0 : i64, scratch_operands = 1 : i64, tpu.core_type = #tpu.core_type<tc>, window_params = [{transform_indices = @transform_0, window_bounds = array<i64: 32, 128>}, {pipeline_mode = #tpu.pipeline_mode<synchronous>, transform_indices = @transform_1, window_bounds = array<i64: 128, 512>}, {pipeline_mode = #tpu.pipeline_mode<synchronous>, transform_indices = @transform_2, window_bounds = array<i64: 1, 256>}, {pipeline_mode = #tpu.pipeline_mode<synchronous>, transform_indices = @transform_3, window_bounds = array<i64: 1, 256>}, {pipeline_mode = #tpu.pipeline_mode<synchronous>, transform_indices = @transform_4, window_bounds = array<i64: 256, 128>}, {pipeline_mode = #tpu.pipeline_mode<synchronous>, transform_indices = @transform_5, window_bounds = array<i64: 1, 128>}, {pipeline_mode = #tpu.pipeline_mode<synchronous>, transform_indices = @transform_6, window_bounds = array<i64: 1, 256>}, {pipeline_mode = #tpu.pipeline_mode<synchronous>, transform_indices = @transform_7, window_bounds = array<i64: 1, 256>}, {transform_indices = @transform_8, window_bounds = array<i64: 32, 128>}]} {
    %c0 = arith.constant 0 : index
    %c0_0 = arith.constant 0 : index
    %0 = vector.load %arg1[%c0, %c0_0] : memref<32x128xf32, #tpu.memory_space<vmem>>, vector<32x128xf32>
    %c0_1 = arith.constant 0 : index
    %c0_2 = arith.constant 0 : index
    %1 = vector.load %arg2[%c0_1, %c0_2] : memref<128x512xf32, #tpu.memory_space<vmem>>, vector<128x512xf32>
    %cst = arith.constant dense<0.000000e+00> : vector<32x512xf32>
    %2 = tpu.matmul %0, %1, %cst {dimension_numbers = #tpu.dot_dimension_numbers<[1], [0], [0], [1], [0, 0, 1, 1], [], []>} : vector<32x128xf32>, vector<128x512xf32>, vector<32x512xf32> -> vector<32x512xf32>
    %c0_3 = arith.constant 0 : index
    %c0_4 = arith.constant 0 : index
    %3 = vector.load %arg10[%c0_3, %c0_4] : memref<32x512xf32, #tpu.memory_space<vmem>>, vector<32x512xf32>
    tpu.vector_store %arg10[%c0_3, %c0_4], %2 {strides = array<i32>} : memref<32x512xf32, #tpu.memory_space<vmem>>, vector<32x512xf32>,
    %c0_5 = arith.constant 0 : index
    %c0_6 = arith.constant 0 : index
    %4 = vector.load %arg7[%c0_5, %c0_6] : memref<1x256xf32, #tpu.memory_space<vmem>>, vector<1x256xf32>
    %c0_7 = arith.constant 0 : index
    %c0_8 = arith.constant 0 : index
    %5 = vector.load %arg8[%c0_7, %c0_8] : memref<1x256xf32, #tpu.memory_space<vmem>>, vector<1x256xf32>
    %c0_9 = arith.constant 0 : index
    %c0_10 = arith.constant 0 : index
    %6 = vector.load %arg10[%c0_9, %c0_10] : memref<32x512xf32, #tpu.memory_space<vmem>>, vector<32x256xf32>
    %c0_11 = arith.constant 0 : index
    %c0_12 = arith.constant 0 : index
    %7 = vector.load %arg3[%c0_11, %c0_12] : memref<1x256xf32, #tpu.memory_space<vmem>>, vector<1x256xf32>
    %8 = vector.broadcast %7 : vector<1x256xf32> to vector<32x256xf32>
    %9 = arith.addf %6, %8 : vector<32x256xf32>
    %cst_13 = arith.constant 5.000000e-01 : f32
    %10 = vector.broadcast %cst_13 : f32 to vector<32x256xf32>
    %11 = arith.mulf %10, %9 : vector<32x256xf32>
    %cst_14 = arith.constant 0.707106769 : f32
    %12 = vector.broadcast %cst_14 : f32 to vector<32x256xf32>
    %13 = arith.mulf %9, %12 : vector<32x256xf32>
    %14 = math.erf %13 : vector<32x256xf32>
    %cst_15 = arith.constant 1.000000e+00 : f32
    %15 = vector.broadcast %cst_15 : f32 to vector<32x256xf32>
    %16 = arith.addf %15, %14 : vector<32x256xf32>
    %17 = arith.mulf %11, %16 : vector<32x256xf32>
    %cst_16 = arith.constant dense<0.000000e+00> : vector<32xf32>
    %18 = vector.multi_reduction <add>, %17, %cst_16 [1] : vector<32x256xf32> to vector<32xf32>
    %19 = vector.shape_cast %18 : vector<32xf32> to vector<32x1xf32>
    %cst_17 = arith.constant 2.560000e+02 : f32
    %20 = vector.broadcast %cst_17 : f32 to vector<32x1xf32>
    %21 = arith.divf %19, %20 : vector<32x1xf32>
    %22 = arith.mulf %17, %17 : vector<32x256xf32>
    %cst_18 = arith.constant dense<0.000000e+00> : vector<32xf32>
    %23 = vector.multi_reduction <add>, %22, %cst_18 [1] : vector<32x256xf32> to vector<32xf32>
    %24 = vector.shape_cast %23 : vector<32xf32> to vector<32x1xf32>
    %cst_19 = arith.constant 2.560000e+02 : f32
    %25 = vector.broadcast %cst_19 : f32 to vector<32x1xf32>
    %26 = arith.divf %24, %25 : vector<32x1xf32>
    %27 = arith.mulf %21, %21 : vector<32x1xf32>
    %28 = arith.subf %26, %27 : vector<32x1xf32>
    %cst_20 = arith.constant 0.000000e+00 : f32
    %29 = vector.broadcast %cst_20 : f32 to vector<32x1xf32>
    %30 = arith.maximumf %28, %29 : vector<32x1xf32>
    %31 = vector.broadcast %21 : vector<32x1xf32> to vector<32x256xf32>
    %32 = arith.subf %17, %31 : vector<32x256xf32>
    %cst_21 = arith.constant 9.99999974E-6 : f32
    %33 = vector.broadcast %cst_21 : f32 to vector<32x1xf32>
    %34 = arith.addf %30, %33 : vector<32x1xf32>
    %35 = math.rsqrt %34 : vector<32x1xf32>
    %36 = vector.broadcast %35 : vector<32x1xf32> to vector<32x256xf32>
    %37 = arith.mulf %32, %36 : vector<32x256xf32>
    %38 = vector.broadcast %4 : vector<1x256xf32> to vector<32x256xf32>
    %39 = arith.mulf %37, %38 : vector<32x256xf32>
    %40 = vector.broadcast %5 : vector<1x256xf32> to vector<32x256xf32>
    %41 = arith.addf %39, %40 : vector<32x256xf32>
    %c0_22 = arith.constant 0 : index
    %c256 = arith.constant 256 : index
    %42 = vector.load %arg10[%c0_22, %c256] : memref<32x512xf32, #tpu.memory_space<vmem>>, vector<32x256xf32>
    %c0_23 = arith.constant 0 : index
    %c0_24 = arith.constant 0 : index
    %43 = vector.load %arg4[%c0_23, %c0_24] : memref<1x256xf32, #tpu.memory_space<vmem>>, vector<1x256xf32>
    %44 = vector.broadcast %43 : vector<1x256xf32> to vector<32x256xf32>
    %45 = arith.addf %42, %44 : vector<32x256xf32>
    %cst_25 = arith.constant dense<0.000000e+00> : vector<32xf32>
    %46 = vector.multi_reduction <add>, %45, %cst_25 [1] : vector<32x256xf32> to vector<32xf32>
    %47 = vector.shape_cast %46 : vector<32xf32> to vector<32x1xf32>
    %cst_26 = arith.constant 2.560000e+02 : f32
    %48 = vector.broadcast %cst_26 : f32 to vector<32x1xf32>
    %49 = arith.divf %47, %48 : vector<32x1xf32>
    %50 = arith.mulf %45, %45 : vector<32x256xf32>
    %cst_27 = arith.constant dense<0.000000e+00> : vector<32xf32>
    %51 = vector.multi_reduction <add>, %50, %cst_27 [1] : vector<32x256xf32> to vector<32xf32>
    %52 = vector.shape_cast %51 : vector<32xf32> to vector<32x1xf32>
    %cst_28 = arith.constant 2.560000e+02 : f32
    %53 = vector.broadcast %cst_28 : f32 to vector<32x1xf32>
    %54 = arith.divf %52, %53 : vector<32x1xf32>
    %55 = arith.mulf %49, %49 : vector<32x1xf32>
    %56 = arith.subf %54, %55 : vector<32x1xf32>
    %cst_29 = arith.constant 0.000000e+00 : f32
    %57 = vector.broadcast %cst_29 : f32 to vector<32x1xf32>
    %58 = arith.maximumf %56, %57 : vector<32x1xf32>
    %59 = vector.broadcast %49 : vector<32x1xf32> to vector<32x256xf32>
    %60 = arith.subf %45, %59 : vector<32x256xf32>
    %cst_30 = arith.constant 9.99999974E-6 : f32
    %61 = vector.broadcast %cst_30 : f32 to vector<32x1xf32>
    %62 = arith.addf %58, %61 : vector<32x1xf32>
    %63 = math.rsqrt %62 : vector<32x1xf32>
    %64 = vector.broadcast %63 : vector<32x1xf32> to vector<32x256xf32>
    %65 = arith.mulf %60, %64 : vector<32x256xf32>
    %66 = vector.broadcast %4 : vector<1x256xf32> to vector<32x256xf32>
    %67 = arith.mulf %65, %66 : vector<32x256xf32>
    %68 = vector.broadcast %5 : vector<1x256xf32> to vector<32x256xf32>
    %69 = arith.addf %67, %68 : vector<32x256xf32>
    %70 = arith.mulf %41, %69 : vector<32x256xf32>
    %c0_31 = arith.constant 0 : index
    %c0_32 = arith.constant 0 : index
    %71 = vector.load %arg5[%c0_31, %c0_32] : memref<256x128xf32, #tpu.memory_space<vmem>>, vector<256x128xf32>
    %cst_33 = arith.constant dense<0.000000e+00> : vector<32x128xf32>
    %72 = tpu.matmul %70, %71, %cst_33 {dimension_numbers = #tpu.dot_dimension_numbers<[1], [0], [0], [1], [0, 0, 1, 1], [], []>} : vector<32x256xf32>, vector<256x128xf32>, vector<32x128xf32> -> vector<32x128xf32>
    %c0_34 = arith.constant 0 : index
    %c0_35 = arith.constant 0 : index
    %73 = vector.load %arg6[%c0_34, %c0_35] : memref<1x128xf32, #tpu.memory_space<vmem>>, vector<1x128xf32>
    %74 = vector.broadcast %73 : vector<1x128xf32> to vector<32x128xf32>
    %75 = arith.addf %72, %74 : vector<32x128xf32>
    %c0_36 = arith.constant 0 : index
    %c0_37 = arith.constant 0 : index
    %76 = vector.load %arg9[%c0_36, %c0_37] : memref<32x128xf32, #tpu.memory_space<vmem>>, vector<32x128xf32>
    tpu.vector_store %arg9[%c0_36, %c0_37], %75 {strides = array<i32>} : memref<32x128xf32, #tpu.memory_space<vmem>>, vector<32x128xf32>,
    return
  }
  func.func @transform_0(%arg0: i32) -> (i32, i32) {
    %c0_i32 = arith.constant 0 : i32
    %c0_i32_0 = arith.constant 0 : i32
    return %arg0, %c0_i32 : i32, i32
  }
  func.func @transform_1(%arg0: i32) -> (i32, i32) {
    %c0_i32 = arith.constant 0 : i32
    %c0_i32_0 = arith.constant 0 : i32
    %c0_i32_1 = arith.constant 0 : i32
    return %c0_i32, %c0_i32_0 : i32, i32
  }
  func.func @transform_2(%arg0: i32) -> (i32, i32) {
    %c0_i32 = arith.constant 0 : i32
    %c0_i32_0 = arith.constant 0 : i32
    %c0_i32_1 = arith.constant 0 : i32
    return %c0_i32, %c0_i32_0 : i32, i32
  }
  func.func @transform_3(%arg0: i32) -> (i32, i32) {
    %c0_i32 = arith.constant 0 : i32
    %c0_i32_0 = arith.constant 0 : i32
    %c0_i32_1 = arith.constant 0 : i32
    return %c0_i32, %c0_i32_0 : i32, i32
  }
  func.func @transform_4(%arg0: i32) -> (i32, i32) {
    %c0_i32 = arith.constant 0 : i32
    %c0_i32_0 = arith.constant 0 : i32
    %c0_i32_1 = arith.constant 0 : i32
    return %c0_i32, %c0_i32_0 : i32, i32
  }
  func.func @transform_5(%arg0: i32) -> (i32, i32) {
    %c0_i32 = arith.constant 0 : i32
    %c0_i32_0 = arith.constant 0 : i32
    %c0_i32_1 = arith.constant 0 : i32
    return %c0_i32, %c0_i32_0 : i32, i32
  }
  func.func @transform_6(%arg0: i32) -> (i32, i32) {
    %c0_i32 = arith.constant 0 : i32
    %c0_i32_0 = arith.constant 0 : i32
    %c0_i32_1 = arith.constant 0 : i32
    return %c0_i32, %c0_i32_0 : i32, i32
  }
  func.func @transform_7(%arg0: i32) -> (i32, i32) {
    %c0_i32 = arith.constant 0 : i32
    %c0_i32_0 = arith.constant 0 : i32
    %c0_i32_1 = arith.constant 0 : i32
    return %c0_i32, %c0_i32_0 : i32, i32
  }
  func.func @transform_8(%arg0: i32) -> (i32, i32) {
    %c0_i32 = arith.constant 0 : i32
    %c0_i32_0 = arith.constant 0 : i32
    return %arg0, %c0_i32 : i32, i32
  }
}

</mosaic_0001>

<llo_original>
// kernel: activator_gating_unit.1
$region0: #{activator_gating_unit.1}
  #allocation0 [shape = 'u32[]', space=smem, size = 0x4, offset = 0x4, fixed_abs, tag = 'smem constant byte address 0x4 - core index']
  #allocation1 [shape = 'u32[144,128]{1,0:T(1,128)}', space=vmem, size = 0x12000, scoped, tag = 'internal scratch']
  #allocation2 [shape = 'f32[32,512]{1,0:T(8,128)}', space=vmem, size = 0x10000, scoped, tag = 'scratch operand']
  %s0 = inlined_call_operand.vmem [shape: f32[128,128], index: 0, kind: input, shape index: {}]
  %s1 = inlined_call_operand.vmem [shape: f32[128,512], index: 1, kind: input, shape index: {}]
  %s2 = inlined_call_operand.vmem [shape: f32[1,256], index: 2, kind: input, shape index: {}]
  %s3 = inlined_call_operand.vmem [shape: f32[1,256], index: 3, kind: input, shape index: {}]
  %s4 = inlined_call_operand.vmem [shape: f32[256,128], index: 4, kind: input, shape index: {}]
  %s5 = inlined_call_operand.vmem [shape: f32[1,128], index: 5, kind: input, shape index: {}]
  %s6 = inlined_call_operand.vmem [shape: f32[1,256], index: 6, kind: input, shape index: {}]
  %s7 = inlined_call_operand.vmem [shape: f32[1,256], index: 7, kind: input, shape index: {}]
  %s8 = inlined_call_operand.hbm [shape: f32[128,128], index: 8, kind: output, shape index: {}]
  %s9 = sld [smem:[#allocation0]]
  $region65: #{activator_gating_unit.1} parent=0
    _
  %s11 = ssub.s32 1, %s9
  %s12 = scalar_select 0, %s11, %s9
  $region1: #{activator_gating_unit.1} parent=0
    #allocation3 [shape = 'u8[32768]{0}', space=vmem, size = 0x8000, scoped, tag = 'output window, operand 0']
    #allocation4 [shape = 's32[2]{0}', space=sflag, size = 0x8, scoped, tag = 'scoped memory for activator_gating_unit.1']
    %13 = vsyncpa [#allocation4], 0
    %s14 = scalar_lea.sflag [#allocation4], 1
    %15 = vsyncpa %s14, 0
    loop: start=0, step=1, limit=6
    $region2: #{activator_gating_unit.1} parent=1 // loop_pre_header
      _
    $region3: #{activator_gating_unit.1} parent=1 // loop_header
      %s17 = sphi 0, %s21
      %p18 = scmp.ge.s32.totalorder %s17, 6
      %s27 = sphi 0, %s29
      %s30 = sphi 0, %s27
      %s31 = sphi 0, %s30
      %s47 = sphi 0, %s31
      %s51 = sphi 0, %s51
      %s53 = sphi 0, %s51
      %s54 = sphi 0, %s53
      %s68 = sphi 0, %s54
      %s72 = sphi 0, %s72
      %s74 = sphi 0, %s72
      %s75 = sphi 0, %s74
      %s89 = sphi 0, %s75
      %s93 = sphi 0, %s93
      %s95 = sphi 0, %s93
      %s96 = sphi 0, %s95
      %s110 = sphi 0, %s96
      %s114 = sphi 0, %s114
      %s116 = sphi 0, %s114
      %s117 = sphi 0, %s116
      %s131 = sphi 0, %s117
      %s135 = sphi 0, %s135
      %s137 = sphi 0, %s135
      %s138 = sphi 0, %s137
      %s152 = sphi 0, %s138
      %s156 = sphi 0, %s156
      %s158 = sphi 0, %s156
      %s159 = sphi 0, %s158
      %s173 = sphi 0, %s159
      %s177 = sphi 0, %s177
      %s179 = sphi 0, %s177
      %s180 = sphi 0, %s179
      %s194 = sphi 0, %s180
      %s200 = sphi 0, %s202
      %s203 = sphi 0, %s200
      %s204 = sphi 0, %s203
      %s220 = sphi 0, %s204
    $region4: #{activator_gating_unit.1} parent=1 // loop_header_branch
      %20 = sbr.rel (%p18) target = $region8
    $region5: #{activator_gating_unit.1} parent=1 // loop_body
      %s22 = ssub.s32 %s17, 1
      %s23 = ssub.s32 %s17, 2
      %s24 = sadd.s32 %s17, 1
      %s25 = ssub.s32 %s17, %s24
      %p26 = scmp.eq.s32.totalorder %s25, 0
      %s28 = sadd.s32 %s27, 1
      %s29 = scalar_select %p26, %s27, %s28
      %p32 = pneg %p26
      %p33 = scmp.eq.s32.totalorder %s17, 3
      %p34 = por %p32, %p33
      %p35 = scmp.ne.s32.totalorder %s27, %s30
      %p36 = scmp.eq.s32.totalorder %s17, 0
      %p37 = por %p35, %p36
      %p38 = scmp.ne.s32.totalorder %s27, %s30
      %p39 = scmp.eq.s32.totalorder %s22, 3
      %p40 = por %p38, %p39
      %p41 = scmp.ne.s32.totalorder %s30, %s31
      %p42 = scmp.eq.s32.totalorder %s22, 0
      %p43 = por %p41, %p42
      %p44 = scmp.ne.s32.totalorder %s30, %s31
      %p45 = scmp.eq.s32.totalorder %s23, 3
      %p46 = por %p44, %p45
      %p48 = scmp.ne.s32.totalorder %s31, %s47
      %p49 = scmp.eq.s32.totalorder %s23, 0
      %p50 = por %p48, %p49
      %s52 = sadd.s32 %s51, 1
      %p55 = scmp.eq.s32.totalorder %s17, 3
      %p56 = scmp.ne.s32.totalorder %s51, %s53
      %p57 = scmp.eq.s32.totalorder %s17, 0
      %p58 = por %p56, %p57
      %p59 = scmp.ne.s32.totalorder %s51, %s53
      %p60 = scmp.eq.s32.totalorder %s22, 3
      %p61 = por %p59, %p60
      %p62 = scmp.ne.s32.totalorder %s53, %s54
      %p63 = scmp.eq.s32.totalorder %s22, 0
      %p64 = por %p62, %p63
      %p65 = scmp.ne.s32.totalorder %s53, %s54
      %p66 = scmp.eq.s32.totalorder %s23, 3
      %p67 = por %p65, %p66
      %p69 = scmp.ne.s32.totalorder %s54, %s68
      %p70 = scmp.eq.s32.totalorder %s23, 0
      %p71 = por %p69, %p70
      %s73 = sadd.s32 %s72, 1
      %p76 = scmp.eq.s32.totalorder %s17, 3
      %p77 = scmp.ne.s32.totalorder %s72, %s74
      %p78 = scmp.eq.s32.totalorder %s17, 0
      %p79 = por %p77, %p78
      %p80 = scmp.ne.s32.totalorder %s72, %s74
      %p81 = scmp.eq.s32.totalorder %s22, 3
      %p82 = por %p80, %p81
      %p83 = scmp.ne.s32.totalorder %s74, %s75
      %p84 = scmp.eq.s32.totalorder %s22, 0
      %p85 = por %p83, %p84
      %p86 = scmp.ne.s32.totalorder %s74, %s75
      %p87 = scmp.eq.s32.totalorder %s23, 3
      %p88 = por %p86, %p87
      %p90 = scmp.ne.s32.totalorder %s75, %s89
      %p91 = scmp.eq.s32.totalorder %s23, 0
      %p92 = por %p90, %p91
      %s94 = sadd.s32 %s93, 1
      %p97 = scmp.eq.s32.totalorder %s17, 3
      %p98 = scmp.ne.s32.totalorder %s93, %s95
      %p99 = scmp.eq.s32.totalorder %s17, 0
      %p100 = por %p98, %p99
      %p101 = scmp.ne.s32.totalorder %s93, %s95
      %p102 = scmp.eq.s32.totalorder %s22, 3
      %p103 = por %p101, %p102
      %p104 = scmp.ne.s32.totalorder %s95, %s96
      %p105 = scmp.eq.s32.totalorder %s22, 0
      %p106 = por %p104, %p105
      %p107 = scmp.ne.s32.totalorder %s95, %s96
      %p108 = scmp.eq.s32.totalorder %s23, 3
      %p109 = por %p107, %p108
      %p111 = scmp.ne.s32.totalorder %s96, %s110
      %p112 = scmp.eq.s32.totalorder %s23, 0
      %p113 = por %p111, %p112
      %s115 = sadd.s32 %s114, 1
      %p118 = scmp.eq.s32.totalorder %s17, 3
      %p119 = scmp.ne.s32.totalorder %s114, %s116
      %p120 = scmp.eq.s32.totalorder %s17, 0
      %p121 = por %p119, %p120
      %p122 = scmp.ne.s32.totalorder %s114, %s116
      %p123 = scmp.eq.s32.totalorder %s22, 3
      %p124 = por %p122, %p123
      %p125 = scmp.ne.s32.totalorder %s116, %s117
      %p126 = scmp.eq.s32.totalorder %s22, 0
      %p127 = por %p125, %p126
      %p128 = scmp.ne.s32.totalorder %s116, %s117
      %p129 = scmp.eq.s32.totalorder %s23, 3
      %p130 = por %p128, %p129
      %p132 = scmp.ne.s32.totalorder %s117, %s131
      %p133 = scmp.eq.s32.totalorder %s23, 0
      %p134 = por %p132, %p133
      %s136 = sadd.s32 %s135, 1
      %p139 = scmp.eq.s32.totalorder %s17, 3
      %p140 = scmp.ne.s32.totalorder %s135, %s137
      %p141 = scmp.eq.s32.totalorder %s17, 0
      %p142 = por %p140, %p141
      %p143 = scmp.ne.s32.totalorder %s135, %s137
      %p144 = scmp.eq.s32.totalorder %s22, 3
      %p145 = por %p143, %p144
      %p146 = scmp.ne.s32.totalorder %s137, %s138
      %p147 = scmp.eq.s32.totalorder %s22, 0
      %p148 = por %p146, %p147
      %p149 = scmp.ne.s32.totalorder %s137, %s138
      %p150 = scmp.eq.s32.totalorder %s23, 3
      %p151 = por %p149, %p150
      %p153 = scmp.ne.s32.totalorder %s138, %s152
      %p154 = scmp.eq.s32.totalorder %s23, 0
      %p155 = por %p153, %p154
      %s157 = sadd.s32 %s156, 1
      %p160 = scmp.eq.s32.totalorder %s17, 3
      %p161 = scmp.ne.s32.totalorder %s156, %s158
      %p162 = scmp.eq.s32.totalorder %s17, 0
      %p163 = por %p161, %p162
      %p164 = scmp.ne.s32.totalorder %s156, %s158
      %p165 = scmp.eq.s32.totalorder %s22, 3
      %p166 = por %p164, %p165
      %p167 = scmp.ne.s32.totalorder %s158, %s159
      %p168 = scmp.eq.s32.totalorder %s22, 0
      %p169 = por %p167, %p168
      %p170 = scmp.ne.s32.totalorder %s158, %s159
      %p171 = scmp.eq.s32.totalorder %s23, 3
      %p172 = por %p170, %p171
      %p174 = scmp.ne.s32.totalorder %s159, %s173
      %p175 = scmp.eq.s32.totalorder %s23, 0
      %p176 = por %p174, %p175
      %s178 = sadd.s32 %s177, 1
      %p181 = scmp.eq.s32.totalorder %s17, 3
      %p182 = scmp.ne.s32.totalorder %s177, %s179
      %p183 = scmp.eq.s32.totalorder %s17, 0
      %p184 = por %p182, %p183
      %p185 = scmp.ne.s32.totalorder %s177, %s179
      %p186 = scmp.eq.s32.totalorder %s22, 3
      %p187 = por %p185, %p186
      %p188 = scmp.ne.s32.totalorder %s179, %s180
      %p189 = scmp.eq.s32.totalorder %s22, 0
      %p190 = por %p188, %p189
      %p191 = scmp.ne.s32.totalorder %s179, %s180
      %p192 = scmp.eq.s32.totalorder %s23, 3
      %p193 = por %p191, %p192
      %p195 = scmp.ne.s32.totalorder %s180, %s194
      %p196 = scmp.eq.s32.totalorder %s23, 0
      %p197 = por %p195, %p196
      %s198 = ssub.s32 %s17, %s24
      %p199 = scmp.eq.s32.totalorder %s198, 0
      %s201 = sadd.s32 %s200, 1
      %s202 = scalar_select %p199, %s200, %s201
      %p205 = pneg %p199
      %p206 = scmp.eq.s32.totalorder %s17, 3
      %p207 = por %p205, %p206
      %p208 = scmp.ne.s32.totalorder %s200, %s203
      %p209 = scmp.eq.s32.totalorder %s17, 0
      %p210 = por %p208, %p209
      %p211 = scmp.ne.s32.totalorder %s200, %s203
      %p212 = scmp.eq.s32.totalorder %s22, 3
      %p213 = por %p211, %p212
      %p214 = scmp.ne.s32.totalorder %s203, %s204
      %p215 = scmp.eq.s32.totalorder %s22, 0
      %p216 = por %p214, %p215
      %p217 = scmp.ne.s32.totalorder %s203, %s204
      %p218 = scmp.eq.s32.totalorder %s23, 3
      %p219 = por %p217, %p218
      %p221 = scmp.ne.s32.totalorder %s204, %s220
      %p222 = scmp.eq.s32.totalorder %s23, 0
      %p223 = por %p221, %p222
      %p224 = scmp.le.s32.totalorder 1, %s17
      %p225 = scmp.lt.s32.totalorder %s17, 5
      %p226 = pnand %p224, %p225
      %p227 = pneg %p226
      // Predicated region
      $region9: #{activator_gating_unit.1} parent=5 // pred_check
        _
      $region10: #{activator_gating_unit.1} parent=5 // pred_check_branch
        %229 = sbr.rel (%p226) target = $region12
      $region11: #{activator_gating_unit.1} parent=5 // pred_region
        %s230 = ssub.s32 %s17, 1
        // Predicated region
        $region13: #{activator_gating_unit.1} parent=11 // pred_check
          %p231 = pneg %p64
        $region14: #{activator_gating_unit.1} parent=11 // pred_check_branch
          %233 = sbr.rel (%p231) target = $region16
        $region15: #{activator_gating_unit.1} parent=11 // pred_region
          _
        $region16: #{activator_gating_unit.1} parent=11 // pred_fallthru
          _
        // Predicated region
        $region17: #{activator_gating_unit.1} parent=11 // pred_check
          %p234 = pneg %p85
        $region18: #{activator_gating_unit.1} parent=11 // pred_check_branch
          %236 = sbr.rel (%p234) target = $region20
        $region19: #{activator_gating_unit.1} parent=11 // pred_region
          _
        $region20: #{activator_gating_unit.1} parent=11 // pred_fallthru
          _
        // Predicated region
        $region21: #{activator_gating_unit.1} parent=11 // pred_check
          %p237 = pneg %p106
        $region22: #{activator_gating_unit.1} parent=11 // pred_check_branch
          %239 = sbr.rel (%p237) target = $region24
        $region23: #{activator_gating_unit.1} parent=11 // pred_region
          _
        $region24: #{activator_gating_unit.1} parent=11 // pred_fallthru
          _
        // Predicated region
        $region25: #{activator_gating_unit.1} parent=11 // pred_check
          %p240 = pneg %p127
        $region26: #{activator_gating_unit.1} parent=11 // pred_check_branch
          %242 = sbr.rel (%p240) target = $region28
        $region27: #{activator_gating_unit.1} parent=11 // pred_region
          _
        $region28: #{activator_gating_unit.1} parent=11 // pred_fallthru
          _
        // Predicated region
        $region29: #{activator_gating_unit.1} parent=11 // pred_check
          %p243 = pneg %p148
        $region30: #{activator_gating_unit.1} parent=11 // pred_check_branch
          %245 = sbr.rel (%p243) target = $region32
        $region31: #{activator_gating_unit.1} parent=11 // pred_region
          _
        $region32: #{activator_gating_unit.1} parent=11 // pred_fallthru
          _
        // Predicated region
        $region33: #{activator_gating_unit.1} parent=11 // pred_check
          %p246 = pneg %p169
        $region34: #{activator_gating_unit.1} parent=11 // pred_check_branch
          %248 = sbr.rel (%p246) target = $region36
        $region35: #{activator_gating_unit.1} parent=11 // pred_region
          _
        $region36: #{activator_gating_unit.1} parent=11 // pred_fallthru
          _
        // Predicated region
        $region37: #{activator_gating_unit.1} parent=11 // pred_check
          %p249 = pneg %p190
        $region38: #{activator_gating_unit.1} parent=11 // pred_check_branch
          %251 = sbr.rel (%p249) target = $region40
        $region39: #{activator_gating_unit.1} parent=11 // pred_region
          _
        $region40: #{activator_gating_unit.1} parent=11 // pred_fallthru
          _
      $region12: #{activator_gating_unit.1} parent=5 // pred_fallthru
        _
      %p252 = scmp.lt.s32.totalorder %s17, 4
      // Predicated region
      $region41: #{activator_gating_unit.1} parent=5 // pred_check
        %p253 = pneg %p252
      $region42: #{activator_gating_unit.1} parent=5 // pred_check_branch
        %255 = sbr.rel (%p253) target = $region44
      $region43: #{activator_gating_unit.1} parent=5 // pred_region
        // Predicated region
        $region45: #{activator_gating_unit.1} parent=43 // pred_check
          %p256 = pneg %p37
        $region46: #{activator_gating_unit.1} parent=43 // pred_check_branch
          %258 = sbr.rel (%p256) target = $region48
        $region47: #{activator_gating_unit.1} parent=43 // pred_region
          %s259 = smul.u32 4, %s17
          %p260 = scmp.lt.s32.totalorder %s259, 15
          %s261 = scalar_select %p260, %s259, 15
          %s262 = smul.addr %s261, 8
          %s263 = scalar_lea.vmem %s0, %s262
          %s264 = smul.u32 4, %s17
        $region48: #{activator_gating_unit.1} parent=43 // pred_fallthru
          _
      $region44: #{activator_gating_unit.1} parent=5 // pred_fallthru
        _
      %p265 = scmp.le.s32.totalorder 1, %s17
      %p266 = scmp.lt.s32.totalorder %s17, 5
      %p267 = pnand %p265, %p266
      %p268 = pneg %p267
      // Predicated region
      $region49: #{activator_gating_unit.1} parent=5 // pred_check
        _
      $region50: #{activator_gating_unit.1} parent=5 // pred_check_branch
        %270 = sbr.rel (%p267) target = $region52
      $region51: #{activator_gating_unit.1} parent=5 // pred_region
        %s271 = ssub.s32 %s17, 1
        %s272 = smul.u32 4, %s22
        %p273 = scmp.lt.s32.totalorder %s272, 15
        %s274 = scalar_select %p273, %s272, 15
        %s275 = smul.addr %s274, 8
        %s276 = scalar_lea.vmem %s0, %s275
        %p277 = pneg %p43
        %p278 = pneg %p40
        %p279 = pneg %p64
        %p280 = pneg %p61
        %p281 = pneg %p85
        %p282 = pneg %p82
        %p283 = pneg %p106
        %p284 = pneg %p103
        %p285 = pneg %p127
        %p286 = pneg %p124
        %p287 = pneg %p148
        %p288 = pneg %p145
        %p289 = pneg %p169
        %p290 = pneg %p166
        %p291 = pneg %p190
        %p292 = pneg %p187
        %p293 = pneg %p216
        %p294 = pneg %p213
        %s295 = sand.u32 %s203, 1
        %s296 = scalar_lea.sflag [#allocation4], %s295
        %s297 = sand.u32 %s203, 1
        %s298 = smul.addr %s297, 32
        %s299 = scalar_lea.vmem [#allocation3], %s298
        %s300 = smul.u32 4, %s22
        %p301 = scmp.lt.s32.totalorder %s300, 15
        %s302 = scalar_select %p301, %s300, 15
        %s303 = smul.addr %s302, 8
        %s304 = scalar_lea.vmem %s0, %s303
        %s305 = smul.u32 4, %s22
        %s306 = smul.u32 4, %s22
        %v307 = vld [vmem:[%s304] sm:$0xff]
        %v308 = vld [vmem:[%s304 + $0x8] sm:$0xff]
        %v309 = vld [vmem:[%s304 + $0x10] sm:$0xff]
        %v310 = vld [vmem:[%s304 + $0x18] sm:$0xff]
        %v311 = vld [vmem:[%s1] sm:$0xff]
        %v312 = vld [vmem:[%s1 + $0x8] sm:$0xff]
        %v313 = vld [vmem:[%s1 + $0x10] sm:$0xff]
        %v314 = vld [vmem:[%s1 + $0x18] sm:$0xff]
        %v315 = vld [vmem:[%s1 + $0x20] sm:$0xff]
        %v316 = vld [vmem:[%s1 + $0x28] sm:$0xff]
        %v317 = vld [vmem:[%s1 + $0x30] sm:$0xff]
        %v318 = vld [vmem:[%s1 + $0x38] sm:$0xff]
        %v319 = vld [vmem:[%s1 + $0x40] sm:$0xff]
        %v320 = vld [vmem:[%s1 + $0x48] sm:$0xff]
        %v321 = vld [vmem:[%s1 + $0x50] sm:$0xff]
        %v322 = vld [vmem:[%s1 + $0x58] sm:$0xff]
        %v323 = vld [vmem:[%s1 + $0x60] sm:$0xff]
        %v324 = vld [vmem:[%s1 + $0x68] sm:$0xff]
        %v325 = vld [vmem:[%s1 + $0x70] sm:$0xff]
        %v326 = vld [vmem:[%s1 + $0x78] sm:$0xff]
        %v327 = vld [vmem:[%s1 + $0x80] sm:$0xff]
        %v328 = vld [vmem:[%s1 + $0x88] sm:$0xff]
        %v329 = vld [vmem:[%s1 + $0x90] sm:$0xff]
        %v330 = vld [vmem:[%s1 + $0x98] sm:$0xff]
        %v331 = vld [vmem:[%s1 + $0xa0] sm:$0xff]
        %v332 = vld [vmem:[%s1 + $0xa8] sm:$0xff]
        %v333 = vld [vmem:[%s1 + $0xb0] sm:$0xff]
        %v334 = vld [vmem:[%s1 + $0xb8] sm:$0xff]
        %v335 = vld [vmem:[%s1 + $0xc0] sm:$0xff]
        %v336 = vld [vmem:[%s1 + $0xc8] sm:$0xff]
        %v337 = vld [vmem:[%s1 + $0xd0] sm:$0xff]
        %v338 = vld [vmem:[%s1 + $0xd8] sm:$0xff]
        %v339 = vld [vmem:[%s1 + $0xe0] sm:$0xff]
        %v340 = vld [vmem:[%s1 + $0xe8] sm:$0xff]
        %v341 = vld [vmem:[%s1 + $0xf0] sm:$0xff]
        %v342 = vld [vmem:[%s1 + $0xf8] sm:$0xff]
        %v343 = vld [vmem:[%s1 + $0x100] sm:$0xff]
        %v344 = vld [vmem:[%s1 + $0x108] sm:$0xff]
        %v345 = vld [vmem:[%s1 + $0x110] sm:$0xff]
        %v346 = vld [vmem:[%s1 + $0x118] sm:$0xff]
        %v347 = vld [vmem:[%s1 + $0x120] sm:$0xff]
        %v348 = vld [vmem:[%s1 + $0x128] sm:$0xff]
        %v349 = vld [vmem:[%s1 + $0x130] sm:$0xff]
        %v350 = vld [vmem:[%s1 + $0x138] sm:$0xff]
        %v351 = vld [vmem:[%s1 + $0x140] sm:$0xff]
        %v352 = vld [vmem:[%s1 + $0x148] sm:$0xff]
        %v353 = vld [vmem:[%s1 + $0x150] sm:$0xff]
        %v354 = vld [vmem:[%s1 + $0x158] sm:$0xff]
        %v355 = vld [vmem:[%s1 + $0x160] sm:$0xff]
        %v356 = vld [vmem:[%s1 + $0x168] sm:$0xff]
        %v357 = vld [vmem:[%s1 + $0x170] sm:$0xff]
        %v358 = vld [vmem:[%s1 + $0x178] sm:$0xff]
        %v359 = vld [vmem:[%s1 + $0x180] sm:$0xff]
        %v360 = vld [vmem:[%s1 + $0x188] sm:$0xff]
        %v361 = vld [vmem:[%s1 + $0x190] sm:$0xff]
        %v362 = vld [vmem:[%s1 + $0x198] sm:$0xff]
        %v363 = vld [vmem:[%s1 + $0x1a0] sm:$0xff]
        %v364 = vld [vmem:[%s1 + $0x1a8] sm:$0xff]
        %v365 = vld [vmem:[%s1 + $0x1b0] sm:$0xff]
        %v366 = vld [vmem:[%s1 + $0x1b8] sm:$0xff]
        %v367 = vld [vmem:[%s1 + $0x1c0] sm:$0xff]
        %v368 = vld [vmem:[%s1 + $0x1c8] sm:$0xff]
        %v369 = vld [vmem:[%s1 + $0x1d0] sm:$0xff]
        %v370 = vld [vmem:[%s1 + $0x1d8] sm:$0xff]
        %v371 = vld [vmem:[%s1 + $0x1e0] sm:$0xff]
        %v372 = vld [vmem:[%s1 + $0x1e8] sm:$0xff]
        %v373 = vld [vmem:[%s1 + $0x1f0] sm:$0xff]
        %v374 = vld [vmem:[%s1 + $0x1f8] sm:$0xff]
        %375 = vmatprep.subr.mxu0 %v312
        %376 = vmatpush1.msra.mxu0 %v311
        %377 = vmatprep.subr.mxu0 %v316
        %378 = vmatpush1.msra.mxu0 %v315
        %379 = vmatprep.subr.mxu0 %v320
        %380 = vmatpush1.msra.mxu0 %v319
        %381 = vmatprep.subr.mxu0 %v324
        %382 = vmatpush1.msra.mxu0 %v323
        %383 = vmatprep.subr.mxu0 %v328
        %384 = vmatpush1.msra.mxu0 %v327
        %385 = vmatprep.subr.mxu0 %v332
        %386 = vmatpush1.msra.mxu0 %v331
        %387 = vmatprep.subr.mxu0 %v336
        %388 = vmatpush1.msra.mxu0 %v335
        %389 = vmatprep.subr.mxu0 %v340
        %390 = vmatpush1.msra.mxu0 %v339
        %391 = vmatprep.subr.mxu0 %v344
        %392 = vmatpush1.msra.mxu0 %v343
        %393 = vmatprep.subr.mxu0 %v348
        %394 = vmatpush1.msra.mxu0 %v347
        %395 = vmatprep.subr.mxu0 %v352
        %396 = vmatpush1.msra.mxu0 %v351
        %397 = vmatprep.subr.mxu0 %v356
        %398 = vmatpush1.msra.mxu0 %v355
        %399 = vmatprep.subr.mxu0 %v360
        %400 = vmatpush1.msra.mxu0 %v359
        %401 = vmatprep.subr.mxu0 %v364
        %402 = vmatpush1.msra.mxu0 %v363
        %403 = vmatprep.subr.mxu0 %v368
        %404 = vmatpush1.msra.mxu0 %v367
        %405 = vmatprep.subr.mxu0 %v372
        %406 = vmatpush1.msra.mxu0 %v371
        %407 = vmatprep.subr.mxu0 0.0
        %408 = vmatpush1.msra.mxu0 0.0
        %409 = vmatprep.subr.mxu0 0.0
        %410 = vmatpush1.msra.mxu0 0.0
        %411 = vmatprep.subr.mxu0 0.0
        %412 = vmatpush1.msra.mxu0 0.0
        %413 = vmatprep.subr.mxu0 0.0
        %414 = vmatpush1.msra.mxu0 0.0
        %415 = vmatprep.subr.mxu0 0.0
        %416 = vmatpush1.msra.mxu0 0.0
        %417 = vmatprep.subr.mxu0 0.0
        %418 = vmatpush1.msra.mxu0 0.0
        %419 = vmatprep.subr.mxu0 0.0
        %420 = vmatpush1.msra.mxu0 0.0
        %421 = vmatprep.subr.mxu0 0.0
        %422 = vmatpush1.msra.mxu0 0.0
        %423 = vmatprep.subr.mxu0 0.0
        %424 = vmatpush1.msra.mxu0 0.0
        %425 = vmatprep.subr.mxu0 0.0
        %426 = vmatpush1.msra.mxu0 0.0
        %427 = vmatprep.subr.mxu0 0.0
        %428 = vmatpush1.msra.mxu0 0.0
        %429 = vmatprep.subr.mxu0 0.0
        %430 = vmatpush1.msra.mxu0 0.0
        %431 = vmatprep.subr.mxu0 0.0
        %432 = vmatpush1.msra.mxu0 0.0
        %433 = vmatprep.subr.mxu0 0.0
        %434 = vmatpush1.msra.mxu0 0.0
        %435 = vmatprep.subr.mxu0 0.0
        %436 = vmatpush1.msra.mxu0 0.0
        %437 = vmatprep.subr.mxu0 0.0
        %438 = vmatpush1.msra.mxu0 0.0
        %439 = vmatprep.mubr.f32.mxu0 0.0
        %440 = vmatmul.mubr.f32.gmra.mrb[0].mxu0 %v307
        %v441 = vpop.f32.mrb[0].mxu0
        %v442 = vadd.f32 0.0, %v441
        %v443 = vpop.f32.mrb[0].mxu0
        %v444 = vadd.f32 0.0, %v443
        %445 = vmatprep.mubr.f32.mxu0 0.0
        %446 = vmatmul.mubr.f32.gmra.mrb[0].mxu0 %v308
        %v447 = vpop.f32.mrb[0].mxu0
        %v448 = vadd.f32 0.0, %v447
        %v449 = vpop.f32.mrb[0].mxu0
        %v450 = vadd.f32 0.0, %v449
        %451 = vmatprep.mubr.f32.mxu0 0.0
        %452 = vmatmul.mubr.f32.gmra.mrb[0].mxu0 %v309
        %v453 = vpop.f32.mrb[0].mxu0
        %v454 = vadd.f32 0.0, %v453
        %v455 = vpop.f32.mrb[0].mxu0
        %v456 = vadd.f32 0.0, %v455
        %457 = vmatprep.mubr.f32.mxu0 0.0
        %458 = vmatmul.mubr.f32.gmra.mrb[0].mxu0 %v310
        %v459 = vpop.f32.mrb[0].mxu0
        %v460 = vadd.f32 0.0, %v459
        %v461 = vpop.f32.mrb[0].mxu0
        %v462 = vadd.f32 0.0, %v461
        %463 = vdwg.mxu0
        %464 = vmatprep.subr.mxu0 %v314
        %465 = vmatpush1.msra.mxu0 %v313
        %466 = vmatprep.subr.mxu0 %v318
        %467 = vmatpush1.msra.mxu0 %v317
        %468 = vmatprep.subr.mxu0 %v322
        %469 = vmatpush1.msra.mxu0 %v321
        %470 = vmatprep.subr.mxu0 %v326
        %471 = vmatpush1.msra.mxu0 %v325
        %472 = vmatprep.subr.mxu0 %v330
        %473 = vmatpush1.msra.mxu0 %v329
        %474 = vmatprep.subr.mxu0 %v334
        %475 = vmatpush1.msra.mxu0 %v333
        %476 = vmatprep.subr.mxu0 %v338
        %477 = vmatpush1.msra.mxu0 %v337
        %478 = vmatprep.subr.mxu0 %v342
        %479 = vmatpush1.msra.mxu0 %v341
        %480 = vmatprep.subr.mxu0 %v346
        %481 = vmatpush1.msra.mxu0 %v345
        %482 = vmatprep.subr.mxu0 %v350
        %483 = vmatpush1.msra.mxu0 %v349
        %484 = vmatprep.subr.mxu0 %v354
        %485 = vmatpush1.msra.mxu0 %v353
        %486 = vmatprep.subr.mxu0 %v358
        %487 = vmatpush1.msra.mxu0 %v357
        %488 = vmatprep.subr.mxu0 %v362
        %489 = vmatpush1.msra.mxu0 %v361
        %490 = vmatprep.subr.mxu0 %v366
        %491 = vmatpush1.msra.mxu0 %v365
        %492 = vmatprep.subr.mxu0 %v370
        %493 = vmatpush1.msra.mxu0 %v369
        %494 = vmatprep.subr.mxu0 %v374
        %495 = vmatpush1.msra.mxu0 %v373
        %496 = vmatprep.subr.mxu0 0.0
        %497 = vmatpush1.msra.mxu0 0.0
        %498 = vmatprep.subr.mxu0 0.0
        %499 = vmatpush1.msra.mxu0 0.0
        %500 = vmatprep.subr.mxu0 0.0
        %501 = vmatpush1.msra.mxu0 0.0
        %502 = vmatprep.subr.mxu0 0.0
        %503 = vmatpush1.msra.mxu0 0.0
        %504 = vmatprep.subr.mxu0 0.0
        %505 = vmatpush1.msra.mxu0 0.0
        %506 = vmatprep.subr.mxu0 0.0
        %507 = vmatpush1.msra.mxu0 0.0
        %508 = vmatprep.subr.mxu0 0.0
        %509 = vmatpush1.msra.mxu0 0.0
        %510 = vmatprep.subr.mxu0 0.0
        %511 = vmatpush1.msra.mxu0 0.0
        %512 = vmatprep.subr.mxu0 0.0
        %513 = vmatpush1.msra.mxu0 0.0
        %514 = vmatprep.subr.mxu0 0.0
        %515 = vmatpush1.msra.mxu0 0.0
        %516 = vmatprep.subr.mxu0 0.0
        %517 = vmatpush1.msra.mxu0 0.0
        %518 = vmatprep.subr.mxu0 0.0
        %519 = vmatpush1.msra.mxu0 0.0
        %520 = vmatprep.subr.mxu0 0.0
        %521 = vmatpush1.msra.mxu0 0.0
        %522 = vmatprep.subr.mxu0 0.0
        %523 = vmatpush1.msra.mxu0 0.0
        %524 = vmatprep.subr.mxu0 0.0
        %525 = vmatpush1.msra.mxu0 0.0
        %526 = vmatprep.subr.mxu0 0.0
        %527 = vmatpush1.msra.mxu0 0.0
        %528 = vmatprep.mubr.f32.mxu0 0.0
        %529 = vmatmul.mubr.f32.gmra.mrb[0].mxu0 %v307
        %v530 = vpop.f32.mrb[0].mxu0
        %v531 = vadd.f32 0.0, %v530
        %v532 = vpop.f32.mrb[0].mxu0
        %v533 = vadd.f32 0.0, %v532
        %534 = vmatprep.mubr.f32.mxu0 0.0
        %535 = vmatmul.mubr.f32.gmra.mrb[0].mxu0 %v308
        %v536 = vpop.f32.mrb[0].mxu0
        %v537 = vadd.f32 0.0, %v536
        %v538 = vpop.f32.mrb[0].mxu0
        %v539 = vadd.f32 0.0, %v538
        %540 = vmatprep.mubr.f32.mxu0 0.0
        %541 = vmatmul.mubr.f32.gmra.mrb[0].mxu0 %v309
        %v542 = vpop.f32.mrb[0].mxu0
        %v543 = vadd.f32 0.0, %v542
        %v544 = vpop.f32.mrb[0].mxu0
        %v545 = vadd.f32 0.0, %v544
        %546 = vmatprep.mubr.f32.mxu0 0.0
        %547 = vmatmul.mubr.f32.gmra.mrb[0].mxu0 %v310
        %v548 = vpop.f32.mrb[0].mxu0
        %v549 = vadd.f32 0.0, %v548
        %v550 = vpop.f32.mrb[0].mxu0
        %v551 = vadd.f32 0.0, %v550
        %552 = vdwg.mxu0
        %553 = vst [vmem:[#allocation2] sm:$0xff] %v442
        %554 = vst [vmem:[#allocation2 + $0x8] sm:$0xff] %v444
        %555 = vst [vmem:[#allocation2 + $0x10] sm:$0xff] %v531
        %556 = vst [vmem:[#allocation2 + $0x18] sm:$0xff] %v533
        %557 = vst [vmem:[#allocation2 + $0x20] sm:$0xff] %v448
        %558 = vst [vmem:[#allocation2 + $0x28] sm:$0xff] %v450
        %559 = vst [vmem:[#allocation2 + $0x30] sm:$0xff] %v537
        %560 = vst [vmem:[#allocation2 + $0x38] sm:$0xff] %v539
        %561 = vst [vmem:[#allocation2 + $0x40] sm:$0xff] %v454
        %562 = vst [vmem:[#allocation2 + $0x48] sm:$0xff] %v456
        %563 = vst [vmem:[#allocation2 + $0x50] sm:$0xff] %v543
        %564 = vst [vmem:[#allocation2 + $0x58] sm:$0xff] %v545
        %565 = vst [vmem:[#allocation2 + $0x60] sm:$0xff] %v460
        %566 = vst [vmem:[#allocation2 + $0x68] sm:$0xff] %v462
        %567 = vst [vmem:[#allocation2 + $0x70] sm:$0xff] %v549
        %568 = vst [vmem:[#allocation2 + $0x78] sm:$0xff] %v551
        %v569 = vld [vmem:[%s6] sm:$0x3]
        %v570 = vld [vmem:[%s7] sm:$0x3]
        %v571 = vld [vmem:[#allocation2] sm:$0xff]
        %v572 = vld [vmem:[#allocation2 + $0x8] sm:$0xff]
        %v573 = vld [vmem:[#allocation2 + $0x20] sm:$0xff]
        %v574 = vld [vmem:[#allocation2 + $0x28] sm:$0xff]
        %v575 = vld [vmem:[#allocation2 + $0x40] sm:$0xff]
        %v576 = vld [vmem:[#allocation2 + $0x48] sm:$0xff]
        %v577 = vld [vmem:[#allocation2 + $0x60] sm:$0xff]
        %v578 = vld [vmem:[#allocation2 + $0x68] sm:$0xff]
        %v579 = vld [vmem:[%s2] sm:$0x3]
        %v581 = vlaneseq
        %v582 = vshrl.u32 %v581, 7
        %v583 = vsub.s32 0, %v582
        %v584 = vrot.slane %v579, %v583
        %v585 = vlaneseq
        %v586 = vshrl.u32 %v585, 7
        %v587 = vsub.s32 1, %v586
        %v588 = vrot.slane %v579, %v587
        %v591 = vadd.f32 %v571, %v584
        %v592 = vadd.f32 %v572, %v588
        %v593 = vadd.f32 %v573, %v584
        %v594 = vadd.f32 %v574, %v588
        %v595 = vadd.f32 %v575, %v584
        %v596 = vadd.f32 %v576, %v588
        %v597 = vadd.f32 %v577, %v584
        %v598 = vadd.f32 %v578, %v588
        %v599 = vmul.f32 %v591, 0.5
        %v600 = vmul.f32 %v592, 0.5
        %v601 = vmul.f32 %v593, 0.5
        %v602 = vmul.f32 %v594, 0.5
        %v603 = vmul.f32 %v595, 0.5
        %v604 = vmul.f32 %v596, 0.5
        %v605 = vmul.f32 %v597, 0.5
        %v606 = vmul.f32 %v598, 0.5
        %v607 = vmul.f32 %v591, 0.70710677
        %v608 = vmul.f32 %v592, 0.70710677
        %v609 = vmul.f32 %v593, 0.70710677
        %v610 = vmul.f32 %v594, 0.70710677
        %v611 = vmul.f32 %v595, 0.70710677
        %v612 = vmul.f32 %v596, 0.70710677
        %v613 = vmul.f32 %v597, 0.70710677
        %v614 = vmul.f32 %v598, 0.70710677
        %v615 = verf.f32.pop %v607
        %v616 = verf.f32.pop %v608
        %v617 = verf.f32.pop %v609
        %v618 = verf.f32.pop %v610
        %v619 = verf.f32.pop %v611
        %v620 = verf.f32.pop %v612
        %v621 = verf.f32.pop %v613
        %v622 = verf.f32.pop %v614
        %v623 = vadd.f32 %v615, 1.0
        %v624 = vadd.f32 %v616, 1.0
        %v625 = vadd.f32 %v617, 1.0
        %v626 = vadd.f32 %v618, 1.0
        %v627 = vadd.f32 %v619, 1.0
        %v628 = vadd.f32 %v620, 1.0
        %v629 = vadd.f32 %v621, 1.0
        %v630 = vadd.f32 %v622, 1.0
        %v631 = vmul.f32 %v599, %v623
        %v632 = vmul.f32 %v600, %v624
        %v633 = vmul.f32 %v601, %v625
        %v634 = vmul.f32 %v602, %v626
        %v635 = vmul.f32 %v603, %v627
        %v636 = vmul.f32 %v604, %v628
        %v637 = vmul.f32 %v605, %v629
        %v638 = vmul.f32 %v606, %v630
        %v639 = vadd.f32 %v631, %v632
        %640 = vadd.xlane.f32.xlu0 %v639
        %v641 = vpop.xlane.xlu0 %640
        %v642 = vadd.f32 %v633, %v634
        %643 = vadd.xlane.f32.xlu0 %v642
        %v644 = vpop.xlane.xlu0 %643
        %v645 = vadd.f32 %v635, %v636
        %646 = vadd.xlane.f32.xlu0 %v645
        %v647 = vpop.xlane.xlu0 %646
        %v648 = vadd.f32 %v637, %v638
        %649 = vadd.xlane.f32.xlu0 %v648
        %v650 = vpop.xlane.xlu0 %649
        %v651 = vrcp.pop 256.0
        %v652 = vmul.f32 %v641, %v651
        %v653 = vmul.f32 %v644, %v651
        %v654 = vmul.f32 %v647, %v651
        %v655 = vmul.f32 %v650, %v651
        %v656 = vmul.f32 %v631, %v631
        %v657 = vmul.f32 %v632, %v632
        %v658 = vmul.f32 %v633, %v633
        %v659 = vmul.f32 %v634, %v634
        %v660 = vmul.f32 %v635, %v635
        %v661 = vmul.f32 %v636, %v636
        %v662 = vmul.f32 %v637, %v637
        %v663 = vmul.f32 %v638, %v638
        %v664 = vadd.f32 %v656, %v657
        %665 = vadd.xlane.f32.xlu0 %v664
        %v666 = vpop.xlane.xlu0 %665
        %v667 = vadd.f32 %v658, %v659
        %668 = vadd.xlane.f32.xlu0 %v667
        %v669 = vpop.xlane.xlu0 %668
        %v670 = vadd.f32 %v660, %v661
        %671 = vadd.xlane.f32.xlu0 %v670
        %v672 = vpop.xlane.xlu0 %671
        %v673 = vadd.f32 %v662, %v663
        %674 = vadd.xlane.f32.xlu0 %v673
        %v675 = vpop.xlane.xlu0 %674
        %v676 = vmul.f32 %v666, %v651
        %v677 = vmul.f32 %v669, %v651
        %v678 = vmul.f32 %v672, %v651
        %v679 = vmul.f32 %v675, %v651
        %v680 = vmul.f32 %v652, %v652
        %v681 = vmul.f32 %v653, %v653
        %v682 = vmul.f32 %v654, %v654
        %v683 = vmul.f32 %v655, %v655
        %v684 = vsub.f32 %v676, %v680
        %v685 = vsub.f32 %v677, %v681
        %v686 = vsub.f32 %v678, %v682
        %v687 = vsub.f32 %v679, %v683
        %v688 = vmax.f32 %v684, 0.0
        %v689 = vmax.f32 %v685, 0.0
        %v690 = vmax.f32 %v686, 0.0
        %v691 = vmax.f32 %v687, 0.0
        %v692 = vsub.f32 %v631, %v652
        %v693 = vsub.f32 %v632, %v652
        %v694 = vsub.f32 %v633, %v653
        %v695 = vsub.f32 %v634, %v653
        %v696 = vsub.f32 %v635, %v654
        %v697 = vsub.f32 %v636, %v654
        %v698 = vsub.f32 %v637, %v655
        %v699 = vsub.f32 %v638, %v655
        %v700 = vadd.f32 %v688, 1e-05
        %v701 = vadd.f32 %v689, 1e-05
        %v702 = vadd.f32 %v690, 1e-05
        %v703 = vadd.f32 %v691, 1e-05
        %v704 = vrsqrt.pop %v700
        %v705 = vrsqrt.pop %v701
        %v706 = vrsqrt.pop %v702
        %v707 = vrsqrt.pop %v703
        %v708 = vmul.f32 %v692, %v704
        %v709 = vmul.f32 %v693, %v704
        %v710 = vmul.f32 %v694, %v705
        %v711 = vmul.f32 %v695, %v705
        %v712 = vmul.f32 %v696, %v706
        %v713 = vmul.f32 %v697, %v706
        %v714 = vmul.f32 %v698, %v707
        %v715 = vmul.f32 %v699, %v707
        %v717 = vlaneseq
        %v718 = vshrl.u32 %v717, 7
        %v719 = vsub.s32 0, %v718
        %v720 = vrot.slane %v569, %v719
        %v721 = vlaneseq
        %v722 = vshrl.u32 %v721, 7
        %v723 = vsub.s32 1, %v722
        %v724 = vrot.slane %v569, %v723
        %v727 = vmul.f32 %v708, %v720
        %v728 = vmul.f32 %v709, %v724
        %v729 = vmul.f32 %v710, %v720
        %v730 = vmul.f32 %v711, %v724
        %v731 = vmul.f32 %v712, %v720
        %v732 = vmul.f32 %v713, %v724
        %v733 = vmul.f32 %v714, %v720
        %v734 = vmul.f32 %v715, %v724
        %v736 = vlaneseq
        %v737 = vshrl.u32 %v736, 7
        %v738 = vsub.s32 0, %v737
        %v739 = vrot.slane %v570, %v738
        %v740 = vlaneseq
        %v741 = vshrl.u32 %v740, 7
        %v742 = vsub.s32 1, %v741
        %v743 = vrot.slane %v570, %v742
        %v746 = vadd.f32 %v727, %v739
        %v747 = vadd.f32 %v728, %v743
        %v748 = vadd.f32 %v729, %v739
        %v749 = vadd.f32 %v730, %v743
        %v750 = vadd.f32 %v731, %v739
        %v751 = vadd.f32 %v732, %v743
        %v752 = vadd.f32 %v733, %v739
        %v753 = vadd.f32 %v734, %v743
        %v754 = vld [vmem:[#allocation2 + $0x10] sm:$0xff]
        %v755 = vld [vmem:[#allocation2 + $0x18] sm:$0xff]
        %v756 = vld [vmem:[#allocation2 + $0x30] sm:$0xff]
        %v757 = vld [vmem:[#allocation2 + $0x38] sm:$0xff]
        %v758 = vld [vmem:[#allocation2 + $0x50] sm:$0xff]
        %v759 = vld [vmem:[#allocation2 + $0x58] sm:$0xff]
        %v760 = vld [vmem:[#allocation2 + $0x70] sm:$0xff]
        %v761 = vld [vmem:[#allocation2 + $0x78] sm:$0xff]
        %v762 = vld [vmem:[%s3] sm:$0x3]
        %v764 = vlaneseq
        %v765 = vshrl.u32 %v764, 7
        %v766 = vsub.s32 0, %v765
        %v767 = vrot.slane %v762, %v766
        %v768 = vlaneseq
        %v769 = vshrl.u32 %v768, 7
        %v770 = vsub.s32 1, %v769
        %v771 = vrot.slane %v762, %v770
        %v774 = vadd.f32 %v754, %v767
        %v775 = vadd.f32 %v755, %v771
        %v776 = vadd.f32 %v756, %v767
        %v777 = vadd.f32 %v757, %v771
        %v778 = vadd.f32 %v758, %v767
        %v779 = vadd.f32 %v759, %v771
        %v780 = vadd.f32 %v760, %v767
        %v781 = vadd.f32 %v761, %v771
        %v782 = vadd.f32 %v774, %v775
        %783 = vadd.xlane.f32.xlu0 %v782
        %v784 = vpop.xlane.xlu0 %783
        %v785 = vadd.f32 %v776, %v777
        %786 = vadd.xlane.f32.xlu0 %v785
        %v787 = vpop.xlane.xlu0 %786
        %v788 = vadd.f32 %v778, %v779
        %789 = vadd.xlane.f32.xlu0 %v788
        %v790 = vpop.xlane.xlu0 %789
        %v791 = vadd.f32 %v780, %v781
        %792 = vadd.xlane.f32.xlu0 %v791
        %v793 = vpop.xlane.xlu0 %792
        %v794 = vmul.f32 %v784, %v651
        %v795 = vmul.f32 %v787, %v651
        %v796 = vmul.f32 %v790, %v651
        %v797 = vmul.f32 %v793, %v651
        %v798 = vmul.f32 %v774, %v774
        %v799 = vmul.f32 %v775, %v775
        %v800 = vmul.f32 %v776, %v776
        %v801 = vmul.f32 %v777, %v777
        %v802 = vmul.f32 %v778, %v778
        %v803 = vmul.f32 %v779, %v779
        %v804 = vmul.f32 %v780, %v780
        %v805 = vmul.f32 %v781, %v781
        %v806 = vadd.f32 %v798, %v799
        %807 = vadd.xlane.f32.xlu0 %v806
        %v808 = vpop.xlane.xlu0 %807
        %v809 = vadd.f32 %v800, %v801
        %810 = vadd.xlane.f32.xlu0 %v809
        %v811 = vpop.xlane.xlu0 %810
        %v812 = vadd.f32 %v802, %v803
        %813 = vadd.xlane.f32.xlu0 %v812
        %v814 = vpop.xlane.xlu0 %813
        %v815 = vadd.f32 %v804, %v805
        %816 = vadd.xlane.f32.xlu0 %v815
        %v817 = vpop.xlane.xlu0 %816
        %v818 = vmul.f32 %v808, %v651
        %v819 = vmul.f32 %v811, %v651
        %v820 = vmul.f32 %v814, %v651
        %v821 = vmul.f32 %v817, %v651
        %v822 = vmul.f32 %v794, %v794
        %v823 = vmul.f32 %v795, %v795
        %v824 = vmul.f32 %v796, %v796
        %v825 = vmul.f32 %v797, %v797
        %v826 = vsub.f32 %v818, %v822
        %v827 = vsub.f32 %v819, %v823
        %v828 = vsub.f32 %v820, %v824
        %v829 = vsub.f32 %v821, %v825
        %v830 = vmax.f32 %v826, 0.0
        %v831 = vmax.f32 %v827, 0.0
        %v832 = vmax.f32 %v828, 0.0
        %v833 = vmax.f32 %v829, 0.0
        %v834 = vsub.f32 %v774, %v794
        %v835 = vsub.f32 %v775, %v794
        %v836 = vsub.f32 %v776, %v795
        %v837 = vsub.f32 %v777, %v795
        %v838 = vsub.f32 %v778, %v796
        %v839 = vsub.f32 %v779, %v796
        %v840 = vsub.f32 %v780, %v797
        %v841 = vsub.f32 %v781, %v797
        %v842 = vadd.f32 %v830, 1e-05
        %v843 = vadd.f32 %v831, 1e-05
        %v844 = vadd.f32 %v832, 1e-05
        %v845 = vadd.f32 %v833, 1e-05
        %v846 = vrsqrt.pop %v842
        %v847 = vrsqrt.pop %v843
        %v848 = vrsqrt.pop %v844
        %v849 = vrsqrt.pop %v845
        %v850 = vmul.f32 %v834, %v846
        %v851 = vmul.f32 %v835, %v846
        %v852 = vmul.f32 %v836, %v847
        %v853 = vmul.f32 %v837, %v847
        %v854 = vmul.f32 %v838, %v848
        %v855 = vmul.f32 %v839, %v848
        %v856 = vmul.f32 %v840, %v849
        %v857 = vmul.f32 %v841, %v849
        %v858 = vmul.f32 %v850, %v720
        %v859 = vmul.f32 %v851, %v724
        %v860 = vmul.f32 %v852, %v720
        %v861 = vmul.f32 %v853, %v724
        %v862 = vmul.f32 %v854, %v720
        %v863 = vmul.f32 %v855, %v724
        %v864 = vmul.f32 %v856, %v720
        %v865 = vmul.f32 %v857, %v724
        %v866 = vadd.f32 %v858, %v739
        %v867 = vadd.f32 %v859, %v743
        %v868 = vadd.f32 %v860, %v739
        %v869 = vadd.f32 %v861, %v743
        %v870 = vadd.f32 %v862, %v739
        %v871 = vadd.f32 %v863, %v743
        %v872 = vadd.f32 %v864, %v739
        %v873 = vadd.f32 %v865, %v743
        %v874 = vmul.f32 %v746, %v866
        %v875 = vmul.f32 %v747, %v867
        %v876 = vmul.f32 %v748, %v868
        %v877 = vmul.f32 %v749, %v869
        %v878 = vmul.f32 %v750, %v870
        %v879 = vmul.f32 %v751, %v871
        %v880 = vmul.f32 %v752, %v872
        %v881 = vmul.f32 %v753, %v873
        %v882 = vld [vmem:[%s4] sm:$0xff]
        %v883 = vld [vmem:[%s4 + $0x8] sm:$0xff]
        %v884 = vld [vmem:[%s4 + $0x10] sm:$0xff]
        %v885 = vld [vmem:[%s4 + $0x18] sm:$0xff]
        %v886 = vld [vmem:[%s4 + $0x20] sm:$0xff]
        %v887 = vld [vmem:[%s4 + $0x28] sm:$0xff]
        %v888 = vld [vmem:[%s4 + $0x30] sm:$0xff]
        %v889 = vld [vmem:[%s4 + $0x38] sm:$0xff]
        %v890 = vld [vmem:[%s4 + $0x40] sm:$0xff]
        %v891 = vld [vmem:[%s4 + $0x48] sm:$0xff]
        %v892 = vld [vmem:[%s4 + $0x50] sm:$0xff]
        %v893 = vld [vmem:[%s4 + $0x58] sm:$0xff]
        %v894 = vld [vmem:[%s4 + $0x60] sm:$0xff]
        %v895 = vld [vmem:[%s4 + $0x68] sm:$0xff]
        %v896 = vld [vmem:[%s4 + $0x70] sm:$0xff]
        %v897 = vld [vmem:[%s4 + $0x78] sm:$0xff]
        %v898 = vld [vmem:[%s4 + $0x80] sm:$0xff]
        %v899 = vld [vmem:[%s4 + $0x88] sm:$0xff]
        %v900 = vld [vmem:[%s4 + $0x90] sm:$0xff]
        %v901 = vld [vmem:[%s4 + $0x98] sm:$0xff]
        %v902 = vld [vmem:[%s4 + $0xa0] sm:$0xff]
        %v903 = vld [vmem:[%s4 + $0xa8] sm:$0xff]
        %v904 = vld [vmem:[%s4 + $0xb0] sm:$0xff]
        %v905 = vld [vmem:[%s4 + $0xb8] sm:$0xff]
        %v906 = vld [vmem:[%s4 + $0xc0] sm:$0xff]
        %v907 = vld [vmem:[%s4 + $0xc8] sm:$0xff]
        %v908 = vld [vmem:[%s4 + $0xd0] sm:$0xff]
        %v909 = vld [vmem:[%s4 + $0xd8] sm:$0xff]
        %v910 = vld [vmem:[%s4 + $0xe0] sm:$0xff]
        %v911 = vld [vmem:[%s4 + $0xe8] sm:$0xff]
        %v912 = vld [vmem:[%s4 + $0xf0] sm:$0xff]
        %v913 = vld [vmem:[%s4 + $0xf8] sm:$0xff]
        %v914 = vld [vmem:[%s5] sm:$0x1]
        %v916 = vlaneseq
        %v917 = vshrl.u32 %v916, 7
        %v918 = vsub.s32 0, %v917
        %v919 = vrot.slane %v914, %v918
        %921 = vmatprep.subr.mxu0 0.0
        %922 = vmatpush1.msra.mxu0 %v882
        %923 = vmatprep.subr.mxu0 0.0
        %924 = vmatpush1.msra.mxu0 %v883
        %925 = vmatprep.subr.mxu0 0.0
        %926 = vmatpush1.msra.mxu0 %v884
        %927 = vmatprep.subr.mxu0 0.0
        %928 = vmatpush1.msra.mxu0 %v885
        %929 = vmatprep.subr.mxu0 0.0
        %930 = vmatpush1.msra.mxu0 %v886
        %931 = vmatprep.subr.mxu0 0.0
        %932 = vmatpush1.msra.mxu0 %v887
        %933 = vmatprep.subr.mxu0 0.0
        %934 = vmatpush1.msra.mxu0 %v888
        %935 = vmatprep.subr.mxu0 0.0
        %936 = vmatpush1.msra.mxu0 %v889
        %937 = vmatprep.subr.mxu0 0.0
        %938 = vmatpush1.msra.mxu0 %v890
        %939 = vmatprep.subr.mxu0 0.0
        %940 = vmatpush1.msra.mxu0 %v891
        %941 = vmatprep.subr.mxu0 0.0
        %942 = vmatpush1.msra.mxu0 %v892
        %943 = vmatprep.subr.mxu0 0.0
        %944 = vmatpush1.msra.mxu0 %v893
        %945 = vmatprep.subr.mxu0 0.0
        %946 = vmatpush1.msra.mxu0 %v894
        %947 = vmatprep.subr.mxu0 0.0
        %948 = vmatpush1.msra.mxu0 %v895
        %949 = vmatprep.subr.mxu0 0.0
        %950 = vmatpush1.msra.mxu0 %v896
        %951 = vmatprep.subr.mxu0 0.0
        %952 = vmatpush1.msra.mxu0 %v897
        %953 = vmatprep.subr.mxu0 0.0
        %954 = vmatpush1.msra.mxu0 %v898
        %955 = vmatprep.subr.mxu0 0.0
        %956 = vmatpush1.msra.mxu0 %v899
        %957 = vmatprep.subr.mxu0 0.0
        %958 = vmatpush1.msra.mxu0 %v900
        %959 = vmatprep.subr.mxu0 0.0
        %960 = vmatpush1.msra.mxu0 %v901
        %961 = vmatprep.subr.mxu0 0.0
        %962 = vmatpush1.msra.mxu0 %v902
        %963 = vmatprep.subr.mxu0 0.0
        %964 = vmatpush1.msra.mxu0 %v903
        %965 = vmatprep.subr.mxu0 0.0
        %966 = vmatpush1.msra.mxu0 %v904
        %967 = vmatprep.subr.mxu0 0.0
        %968 = vmatpush1.msra.mxu0 %v905
        %969 = vmatprep.subr.mxu0 0.0
        %970 = vmatpush1.msra.mxu0 %v906
        %971 = vmatprep.subr.mxu0 0.0
        %972 = vmatpush1.msra.mxu0 %v907
        %973 = vmatprep.subr.mxu0 0.0
        %974 = vmatpush1.msra.mxu0 %v908
        %975 = vmatprep.subr.mxu0 0.0
        %976 = vmatpush1.msra.mxu0 %v909
        %977 = vmatprep.subr.mxu0 0.0
        %978 = vmatpush1.msra.mxu0 %v910
        %979 = vmatprep.subr.mxu0 0.0
        %980 = vmatpush1.msra.mxu0 %v911
        %981 = vmatprep.subr.mxu0 0.0
        %982 = vmatpush1.msra.mxu0 %v912
        %983 = vmatprep.subr.mxu0 0.0
        %984 = vmatpush1.msra.mxu0 %v913
        %985 = vmatprep.mubr.f32.mxu0 %v875
        %986 = vmatmul.mubr.f32.gmra.mrb[0].mxu0 %v874
        %v987 = vpop.f32.mrb[0].mxu0
        %v988 = vadd.f32 %v919, %v987
        %v989 = vpop.f32.mrb[0].mxu0
        %990 = vmatprep.mubr.f32.mxu0 %v877
        %991 = vmatmul.mubr.f32.gmra.mrb[0].mxu0 %v876
        %v992 = vpop.f32.mrb[0].mxu0
        %v993 = vadd.f32 %v919, %v992
        %v994 = vpop.f32.mrb[0].mxu0
        %995 = vmatprep.mubr.f32.mxu0 %v879
        %996 = vmatmul.mubr.f32.gmra.mrb[0].mxu0 %v878
        %v997 = vpop.f32.mrb[0].mxu0
        %v998 = vadd.f32 %v919, %v997
        %v999 = vpop.f32.mrb[0].mxu0
        %1000 = vmatprep.mubr.f32.mxu0 %v881
        %1001 = vmatmul.mubr.f32.gmra.mrb[0].mxu0 %v880
        %v1002 = vpop.f32.mrb[0].mxu0
        %v1003 = vadd.f32 %v919, %v1002
        %v1004 = vpop.f32.mrb[0].mxu0
        %1005 = vdwg.mxu0
        %1006 = vst [vmem:[%s299] sm:$0xff] %v988
        %1007 = vst [vmem:[%s299 + $0x8] sm:$0xff] %v993
        %1008 = vst [vmem:[%s299 + $0x10] sm:$0xff] %v998
        %1009 = vst [vmem:[%s299 + $0x18] sm:$0xff] %v1003
        %s1010 = sand.u32 %s203, 1
        %s1011 = scalar_lea.sflag [#allocation4], %s1010
        %s1012 = sand.u32 %s203, 1
        %s1013 = smul.addr %s1012, 32
        %s1014 = scalar_lea.vmem [#allocation3], %s1013
        // Predicated region
        $region53: #{activator_gating_unit.1} parent=51 // pred_check
          %p1015 = pneg %p213
        $region54: #{activator_gating_unit.1} parent=51 // pred_check_branch
          %1017 = sbr.rel (%p1015) target = $region56
        $region55: #{activator_gating_unit.1} parent=51 // pred_region
          %s1018 = smul.u32 4, %s22
          %s1020 = ssub.s32 512, 512
          %1021 = vsyncadd %s1011, %s1020
          %s1022 = smul.addr %s1018, 128
          %s1023 = scalar_lea.hbm %s8, %s1022
          %s1024 = sshll.u32 %s1014, 4
          %s1025 = int_to_ptr.vmem [resolvable:$true] %s1024
          %1030 = dma.vmem_to_hbm [thread:$0]  %s1025, 512, %s1023, %s1011, 128, 128, 8
        $region56: #{activator_gating_unit.1} parent=51 // pred_fallthru
          _
      $region52: #{activator_gating_unit.1} parent=5 // pred_fallthru
        _
      %p1031 = scmp.le.s32.totalorder 2, %s17
      // Predicated region
      $region57: #{activator_gating_unit.1} parent=5 // pred_check
        %p1032 = pneg %p1031
      $region58: #{activator_gating_unit.1} parent=5 // pred_check_branch
        %1034 = sbr.rel (%p1032) target = $region60
      $region59: #{activator_gating_unit.1} parent=5 // pred_region
        %s1035 = ssub.s32 %s17, 2
        // Predicated region
        $region61: #{activator_gating_unit.1} parent=59 // pred_check
          %p1036 = pneg %p219
        $region62: #{activator_gating_unit.1} parent=59 // pred_check_branch
          %1038 = sbr.rel (%p1036) target = $region64
        $region63: #{activator_gating_unit.1} parent=59 // pred_region
          %s1039 = sand.u32 %s204, 1
          %s1040 = scalar_lea.sflag [#allocation4], %s1039
          %s1041 = sand.u32 %s204, 1
          %s1042 = smul.addr %s1041, 32
          %s1043 = scalar_lea.vmem [#allocation3], %s1042
          %1044 = dma.done %s1040, 512
        $region64: #{activator_gating_unit.1} parent=59 // pred_fallthru
          _
      $region60: #{activator_gating_unit.1} parent=5 // pred_fallthru
        _
    $region6: #{activator_gating_unit.1} parent=1 // loop_footer
      %s21 = sadd.s32 1, %s17
    $region7: #{activator_gating_unit.1} parent=1 // loop_footer_branch
      %16 = sbr.rel target = $region3
    $region8: #{activator_gating_unit.1} parent=1 // loop_exit
      _
    %1045 = vsyncpa [#allocation4], 1
    %s1046 = scalar_lea.sflag [#allocation4], 1
    %1047 = vsyncpa %s1046, 1

</llo_original>
